<compile_context>
chip_gen: v6e
topology: v6e:2x2x1
jax: 0.10.0
libtpu: 0.0.40
codegen_flags: <defaults>
</compile_context>

<pallas_src>
import functools

import jax
import jax.numpy as jnp
from jax.experimental import pallas as pl
from jax.experimental.pallas import tpu as pltpu


def _round_up(x, m):
    return ((x + m - 1) // m) * m


def _tpu_vmem_capacity_bytes():
    """Physical VMEM of the current chip; conservative 64 MiB fallback."""
    try:
        return int(pltpu.get_tpu_info().vmem_capacity_bytes)
    except Exception:
        return 64 << 20


def _choose_tf(d_ff, target):
    """Largest multiple-of-128 divisor of d_ff that is <= target."""
    c = (min(target, d_ff) // 128) * 128
    while c >= 128:
        if d_ff % c == 0:
            return c
        c -= 128
    # d_ff is padded to a multiple of 128 by prepare_weights, so we only get
    # here for unpadded tiny d_ff; use the full (un-tiled) extent.
    return d_ff


def _ffn_kernel(x_ref, w13_ref, w2_ref, o_ref, acc_ref):
    # x_ref  : (tm, d_model)        bf16
    # w13_ref: (2, d_model, tf)     bf16   [0]=w1 tile, [1]=w3 tile
    # w2_ref : (tf, d_model)        bf16
    # o_ref  : (tm, d_model)        out dtype
    # acc_ref: (tm, d_model)        f32 accumulator, resident across the d_ff axis
    j = pl.program_id(1)

    @pl.when(j == 0)
    def _init():
        acc_ref[...] = jnp.zeros_like(acc_ref)

    x = x_ref[...]
    a = jnp.dot(x, w13_ref[0], preferred_element_type=jnp.float32)   # w1(x) tile
    b = jnp.dot(x, w13_ref[1], preferred_element_type=jnp.float32)   # w3(x) tile
    # SiLU(a) * b in f32 (sigmoid goes to the EUP slot, hidden under the MXU).
    h = (a * jax.nn.sigmoid(a)) * b
    acc_ref[...] += jnp.dot(h.astype(w2_ref.dtype), w2_ref[...],
                            preferred_element_type=jnp.float32)

    @pl.when(j == pl.num_programs(1) - 1)
    def _finalize():
        o_ref[...] = acc_ref[...].astype(o_ref.dtype)


def prepare_weights(w1, w3, w2, compute_dtype=jnp.bfloat16):
    """Call ONCE per model: fuse w1/w3, cast to bf16, pad d_ff to a multiple of 128.

    w1, w3: [d_model, d_ff]; w2: [d_ff, d_model].
    Returns (w13, w2c) with w13: [2, d_model, d_ff_pad], w2c: [d_ff_pad, d_model].
    """
    d_model, d_ff = w1.shape
    d_ff_pad = max(_round_up(d_ff, 128), 128)
    w13 = jnp.stack([w1, w3], axis=0).astype(compute_dtype)
    w2c = w2.astype(compute_dtype)
    if d_ff_pad != d_ff:
        # Zero-padding is exact: silu(0) * 0 == 0 and zero rows of w2 add 0.
        w13 = jnp.pad(w13, ((0, 0), (0, 0), (0, d_ff_pad - d_ff)))
        w2c = jnp.pad(w2c, ((0, d_ff_pad - d_ff), (0, 0)))
    return w13, w2c


@functools.partial(jax.jit, static_argnums=(3, 4, 5))
def _feed_forward_impl(x, w13, w2, tm, tf, vmem_cap):
    orig_shape = x.shape
    out_dtype = x.dtype
    d_model = orig_shape[-1]
    d_ff = w13.shape[2]          # already padded to a multiple of 128

    xc = x.reshape(-1, d_model).astype(jnp.bfloat16)
    m = xc.shape[0]

    # Shrink the token tile for small inputs (multiple of 16 for bf16 sublane
    # packing), then pad the token axis to a whole number of tiles.
    tm_eff = max(16, min(tm, _round_up(m, 16)))
    m_pad = _round_up(m, tm_eff)
    if m_pad != m:
        xc = jnp.pad(xc, ((0, m_pad - m), (0, 0)))

    tf_eff = _choose_tf(d_ff, tf)
    n_tok_tiles = m_pad // tm_eff

    # VMEM budget for this tile plan (double-buffered operands + f32 accumulator
    # + in-kernel f32 a/b/h temporaries), clamped to the chip's physical VMEM.
    bf = 2
    out_bytes = jnp.dtype(out_dtype).itemsize
    vmem_bytes = (
        2 * tm_eff * d_model * bf              # x tile, double-buffered
        + 2 * 2 * d_model * tf_eff * bf        # fused w1/w3 tile, double-buffered
        + 2 * tf_eff * d_model * bf            # w2 tile, double-buffered
        + 2 * tm_eff * d_model * out_bytes     # output tile, double-buffered
        + tm_eff * d_model * 4                 # f32 accumulator scratch
        + 3 * tm_eff * tf_eff * 4              # a / b / h f32 temporaries
    )
    vmem_limit = int(max(min(vmem_bytes + (8 << 20), vmem_cap - (4 << 20)),
                         32 << 20))

    cost = pl.CostEstimate(
        flops=6 * m_pad * d_model * d_ff,
        transcendentals=m_pad * d_ff,
        bytes_accessed=int(
            m_pad * d_model * bf                           # activations in
            + n_tok_tiles * (w13.size + w2.size) * bf      # weights re-streamed per token tile
            + m_pad * d_model * out_bytes                  # output
        ),
    )

    out = pl.pallas_call(
        _ffn_kernel,
        out_shape=jax.ShapeDtypeStruct((m_pad, d_model), out_dtype),
        grid_spec=pltpu.PrefetchScalarGridSpec(
            num_scalar_prefetch=0,
            grid=(n_tok_tiles, d_ff // tf_eff),            # reduction (d_ff) axis last
            in_specs=[
                pl.BlockSpec((tm_eff, d_model), lambda i, j: (i, 0)),       # x
                pl.BlockSpec((2, d_model, tf_eff), lambda i, j: (0, 0, j)), # w1|w3
                pl.BlockSpec((tf_eff, d_model), lambda i, j: (j, 0)),       # w2
            ],
            out_specs=pl.BlockSpec((tm_eff, d_model), lambda i, j: (i, 0)),
            scratch_shapes=[pltpu.VMEM((tm_eff, d_model), jnp.float32)],
        ),
        compiler_params=pltpu.CompilerParams(
            dimension_semantics=("parallel", "arbitrary"),
            vmem_limit_bytes=vmem_limit,
        ),
        cost_estimate=cost,
    )(xc, w13, w2)

    return out[:m].reshape(orig_shape)


def feed_forward(x, w13, w2, *, tm=None, tf=None):
    """x: [..., d_model]; (w13, w2) from prepare_weights()."""
    vmem_cap = _tpu_vmem_capacity_bytes()
    big_vmem = vmem_cap >= (100 << 20)     # v5e / v6e: 128 MiB; v7x: 64 MiB
    if tm is None:
        tm = 1024 if big_vmem else 512     # keep prefill above the HBM ridge
    if tf is None:
        tf = 512 if big_vmem else 256      # keep the plan inside physical VMEM
    return _feed_forward_impl(x, w13, w2, int(tm), int(tf), int(vmem_cap))


def feed_forward_ref(x, w1, w3, w2):
    """Pure-JAX reference mimicking the kernel's bf16-compute / f32-accumulate path."""
    xb = x.astype(jnp.bfloat16)
    a = jnp.dot(xb, w1.astype(jnp.bfloat16), preferred_element_type=jnp.float32)
    b = jnp.dot(xb, w3.astype(jnp.bfloat16), preferred_element_type=jnp.float32)
    h = (a * jax.nn.sigmoid(a)) * b
    return jnp.dot(h.astype(jnp.bfloat16), w2.astype(jnp.bfloat16),
                   preferred_element_type=jnp.float32).astype(x.dtype)


if __name__ == "__main__":
    # Small shapes consistent with the module (original: d_model=4096, d_ff=14336).
    batch, seq = 2, 8
    d_model, d_ff = 256, 512

    key = jax.random.PRNGKey(0)
    kx, k1, k3, k2 = jax.random.split(key, 4)

    # Deterministic parameter init (kaiming-uniform-like scale of nn.Linear).
    bound1 = 1.0 / (d_model ** 0.5)
    bound2 = 1.0 / (d_ff ** 0.5)
    w1 = jax.random.uniform(k1, (d_model, d_ff), jnp.float32, -bound1, bound1)
    w3 = jax.random.uniform(k3, (d_model, d_ff), jnp.float32, -bound1, bound1)
    w2 = jax.random.uniform(k2, (d_ff, d_model), jnp.float32, -bound2, bound2)

    x = jax.random.normal(kx, (batch, seq, d_model), jnp.float32)

    # Weight prep happens once (fused bf16 layout), not per forward call.
    w13, w2c = prepare_weights(w1, w3, w2)

    out = feed_forward(x, w13, w2c)
    jax.block_until_ready(out)

    ref = feed_forward_ref(x.reshape(-1, d_model), w1, w3, w2).reshape(x.shape)
    assert out.shape == x.shape
    max_err = float(jnp.max(jnp.abs(out - ref)))
    assert jnp.allclose(out, ref, atol=2e-2, rtol=2e-2), max_err

    print("KERNEL_OK")
</pallas_src>

<mosaic_0001>
module attributes {stable_mosaic.version = 11 : i64} {
  func.func @_ffn_kernel(%arg0: i32, %arg1: i32, %arg2: memref<16x256xbf16, #tpu.memory_space<vmem>>, %arg3: memref<2x256x256xbf16, #tpu.memory_space<vmem>>, %arg4: memref<256x256xbf16, #tpu.memory_space<vmem>>, %arg5: memref<16x256xf32, #tpu.memory_space<vmem>>, %arg6: memref<16x256xf32, #tpu.memory_space<vmem>>) attributes {dimension_semantics = [#tpu.dimension_semantics<parallel>, #tpu.dimension_semantics<arbitrary>], iteration_bounds = array<i64: 1, 2>, scalar_prefetch = 0 : i64, scratch_operands = 1 : i64, tpu.core_type = #tpu.core_type<tc>, window_params = [{transform_indices = @transform_0, window_bounds = array<i64: 16, 256>}, {transform_indices = @transform_1, window_bounds = array<i64: 2, 256, 256>}, {transform_indices = @transform_2, window_bounds = array<i64: 256, 256>}, {transform_indices = @transform_3, window_bounds = array<i64: 16, 256>}]} {
    %c0_i32 = arith.constant 0 : i32
    %0 = arith.cmpi eq, %arg1, %c0_i32 : i32
    %1 = arith.extui %0 : i1 to i32
    %c0_i32_0 = arith.constant 0 : i32
    %2 = arith.cmpi ne, %1, %c0_i32_0 : i32
    scf.if %2 {
      %cst_17 = arith.constant 0.000000e+00 : f32
      %26 = vector.broadcast %cst_17 : f32 to vector<16x256xf32>
      %c0_18 = arith.constant 0 : index
      %c0_19 = arith.constant 0 : index
      %27 = vector.load %arg6[%c0_18, %c0_19] : memref<16x256xf32, #tpu.memory_space<vmem>>, vector<16x256xf32>
      tpu.vector_store %arg6[%c0_18, %c0_19], %26 {strides = array<i32>} : memref<16x256xf32, #tpu.memory_space<vmem>>, vector<16x256xf32>,
    } else {
    }
    %c0 = arith.constant 0 : index
    %c0_1 = arith.constant 0 : index
    %3 = vector.load %arg2[%c0, %c0_1] : memref<16x256xbf16, #tpu.memory_space<vmem>>, vector<16x256xbf16>
    %c0_2 = arith.constant 0 : index
    %c0_3 = arith.constant 0 : index
    %c0_4 = arith.constant 0 : index
    %4 = vector.load %arg3[%c0_2, %c0_3, %c0_4] : memref<2x256x256xbf16, #tpu.memory_space<vmem>>, vector<1x256x256xbf16>
    %5 = vector.shape_cast %4 : vector<1x256x256xbf16> to vector<256x256xbf16>
    %cst = arith.constant dense<0.000000e+00> : vector<16x256xf32>
    %6 = tpu.matmul %3, %5, %cst {dimension_numbers = #tpu.dot_dimension_numbers<[1], [0], [0], [1], [0, 0, 1, 1], [], []>} : vector<16x256xbf16>, vector<256x256xbf16>, vector<16x256xf32> -> vector<16x256xf32>
    %c1 = arith.constant 1 : index
    %c0_5 = arith.constant 0 : index
    %c0_6 = arith.constant 0 : index
    %7 = vector.load %arg3[%c1, %c0_5, %c0_6] : memref<2x256x256xbf16, #tpu.memory_space<vmem>>, vector<1x256x256xbf16>
    %8 = vector.shape_cast %7 : vector<1x256x256xbf16> to vector<256x256xbf16>
    %cst_7 = arith.constant dense<0.000000e+00> : vector<16x256xf32>
    %9 = tpu.matmul %3, %8, %cst_7 {dimension_numbers = #tpu.dot_dimension_numbers<[1], [0], [0], [1], [0, 0, 1, 1], [], []>} : vector<16x256xbf16>, vector<256x256xbf16>, vector<16x256xf32> -> vector<16x256xf32>
    %10 = arith.negf %6 : vector<16x256xf32>
    %11 = math.exp %10 : vector<16x256xf32>
    %cst_8 = arith.constant 1.000000e+00 : f32
    %12 = vector.broadcast %cst_8 : f32 to vector<16x256xf32>
    %13 = arith.addf %12, %11 : vector<16x256xf32>
    %14 = arith.divf %12, %13 : vector<16x256xf32>
    %15 = arith.mulf %6, %14 : vector<16x256xf32>
    %16 = arith.mulf %15, %9 : vector<16x256xf32>
    %c0_9 = arith.constant 0 : index
    %c0_10 = arith.constant 0 : index
    %17 = vector.load %arg6[%c0_9, %c0_10] : memref<16x256xf32, #tpu.memory_space<vmem>>, vector<16x256xf32>
    %18 = arith.truncf %16 : vector<16x256xf32> to vector<16x256xbf16>
    %c0_11 = arith.constant 0 : index
    %c0_12 = arith.constant 0 : index
    %19 = vector.load %arg4[%c0_11, %c0_12] : memref<256x256xbf16, #tpu.memory_space<vmem>>, vector<256x256xbf16>
    %cst_13 = arith.constant dense<0.000000e+00> : vector<16x256xf32>
    %20 = tpu.matmul %18, %19, %cst_13 {dimension_numbers = #tpu.dot_dimension_numbers<[1], [0], [0], [1], [0, 0, 1, 1], [], []>} : vector<16x256xbf16>, vector<256x256xbf16>, vector<16x256xf32> -> vector<16x256xf32>
    %21 = arith.addf %17, %20 : vector<16x256xf32>
    %c0_14 = arith.constant 0 : index
    %c0_15 = arith.constant 0 : index
    %22 = vector.load %arg6[%c0_14, %c0_15] : memref<16x256xf32, #tpu.memory_space<vmem>>, vector<16x256xf32>
    tpu.vector_store %arg6[%c0_14, %c0_15], %21 {strides = array<i32>} : memref<16x256xf32, #tpu.memory_space<vmem>>, vector<16x256xf32>,
    %c1_i32 = arith.constant 1 : i32
    %23 = arith.cmpi eq, %arg1, %c1_i32 : i32
    %24 = arith.extui %23 : i1 to i32
    %c0_i32_16 = arith.constant 0 : i32
    %25 = arith.cmpi ne, %24, %c0_i32_16 : i32
    scf.if %25 {
      %c0_17 = arith.constant 0 : index
      %c0_18 = arith.constant 0 : index
      %26 = vector.load %arg6[%c0_17, %c0_18] : memref<16x256xf32, #tpu.memory_space<vmem>>, vector<16x256xf32>
      %c0_19 = arith.constant 0 : index
      %c0_20 = arith.constant 0 : index
      %27 = vector.load %arg5[%c0_19, %c0_20] : memref<16x256xf32, #tpu.memory_space<vmem>>, vector<16x256xf32>
      tpu.vector_store %arg5[%c0_19, %c0_20], %26 {strides = array<i32>} : memref<16x256xf32, #tpu.memory_space<vmem>>, vector<16x256xf32>,
    } else {
    }
    return
  }
  func.func @transform_0(%arg0: i32, %arg1: i32) -> (i32, i32) {
    %c0_i32 = arith.constant 0 : i32
    %c0_i32_0 = arith.constant 0 : i32
    return %arg0, %c0_i32 : i32, i32
  }
  func.func @transform_1(%arg0: i32, %arg1: i32) -> (i32, i32, i32) {
    %c0_i32 = arith.constant 0 : i32
    %c0_i32_0 = arith.constant 0 : i32
    %c0_i32_1 = arith.constant 0 : i32
    return %c0_i32, %c0_i32_0, %arg1 : i32, i32, i32
  }
  func.func @transform_2(%arg0: i32, %arg1: i32) -> (i32, i32) {
    %c0_i32 = arith.constant 0 : i32
    %c0_i32_0 = arith.constant 0 : i32
    return %arg1, %c0_i32 : i32, i32
  }
  func.func @transform_3(%arg0: i32, %arg1: i32) -> (i32, i32) {
    %c0_i32 = arith.constant 0 : i32
    %c0_i32_0 = arith.constant 0 : i32
    return %arg0, %c0_i32 : i32, i32
  }
}

</mosaic_0001>

<llo_original>
// kernel: _feed_forward_impl.1
$region0: #{_feed_forward_impl.1}
  #allocation0 [shape = 'u32[]', space=smem, size = 0x4, offset = 0x4, fixed_abs, tag = 'smem constant byte address 0x4 - core index']
  #allocation1 [shape = 'u32[144,128]{1,0:T(1,128)}', space=vmem, size = 0x12000, scoped, tag = 'internal scratch']
  #allocation2 [shape = 'f32[16,256]{1,0:T(8,128)}', space=vmem, size = 0x4000, scoped, tag = 'scratch operand']
  %s0 = inlined_call_operand.vmem [shape: bf16[16,256], index: 0, kind: input, shape index: {}]
  %s1 = inlined_call_operand.hbm [shape: bf16[2,256,512], index: 1, kind: input, shape index: {}]
  %s2 = inlined_call_operand.hbm [shape: bf16[512,256], index: 2, kind: input, shape index: {}]
  %s3 = inlined_call_operand.hbm [shape: f32[16,256], index: 3, kind: output, shape index: {}]
  %s4 = sld [smem:[#allocation0]]
  $region61: #{_feed_forward_impl.1} parent=0
    _
  %s6 = ssub.s32 1, %s4
  %s7 = scalar_select 0, %s6, %s4
  $region1: #{_feed_forward_impl.1} parent=0
    #allocation3 [shape = 'u8[524288]{0}', space=vmem, size = 0x80000, scoped, tag = 'input window, operand 1']
    #allocation4 [shape = 's32[2]{0}', space=sflag, size = 0x8, scoped, tag = 'scoped memory for _feed_forward_impl.1']
    #allocation5 [shape = 's32[2]{0}', space=sflag, size = 0x8, scoped, tag = 'scoped memory for _feed_forward_impl.1']
    #allocation6 [shape = 'u8[262144]{0}', space=vmem, size = 0x40000, scoped, tag = 'input window, operand 2']
    #allocation7 [shape = 's32[2]{0}', space=sflag, size = 0x8, scoped, tag = 'scoped memory for _feed_forward_impl.1']
    #allocation8 [shape = 'u8[16384]{0}', space=vmem, size = 0x4000, scoped, tag = 'output window, operand 0, single buffered']
    %8 = vsyncpa [#allocation4], 0
    %s9 = scalar_lea.sflag [#allocation4], 1
    %10 = vsyncpa %s9, 0
    %11 = vsyncpa [#allocation7], 0
    %s12 = scalar_lea.sflag [#allocation7], 1
    %13 = vsyncpa %s12, 0
    %14 = vsyncpa [#allocation5], 0
    loop: start=0, step=1, limit=4
    $region2: #{_feed_forward_impl.1} parent=1 // loop_pre_header
      _
    $region3: #{_feed_forward_impl.1} parent=1 // loop_header
      %s16 = sphi 0, %s20
      %p17 = scmp.ge.s32.totalorder %s16, 4
      %s23 = sphi 0, %s35
      %s24 = sphi 0, %s31
      %s25 = sphi 0, %s23
      %s26 = sphi 0, %s24
      %s27 = sphi 0, %s25
      %s28 = sphi 0, %s26
      %s38 = sphi 0, %s40
      %s41 = sphi 0, %s38
      %s42 = sphi 0, %s41
      %s58 = sphi 0, %s42
      %s64 = sphi 0, %s66
      %s67 = sphi 0, %s64
      %s68 = sphi 0, %s67
      %s84 = sphi 0, %s68
      %s90 = sphi 0, %s92
      %s93 = sphi 0, %s90
      %s94 = sphi 0, %s93
      %s110 = sphi 0, %s94
      %s116 = sphi 0, %s118
      %s119 = sphi 0, %s116
      %s120 = sphi 0, %s119
      %s136 = sphi 0, %s120
    $region4: #{_feed_forward_impl.1} parent=1 // loop_header_branch
      %19 = sbr.rel (%p17) target = $region8
    $region5: #{_feed_forward_impl.1} parent=1 // loop_body
      %s21 = ssub.s32 %s16, 1
      %s22 = ssub.s32 %s16, 2
      %s29 = sadd.s32 1, %s24
      %p30 = scmp.ge.s32.totalorder %s29, 2
      %s31 = scalar_select %p30, 0, %s29
      %s32 = sadd.s32 1, %s23
      %s33 = scalar_select %p30, %s32, %s23
      %p34 = scmp.ge.s32.totalorder %s33, 1
      %s35 = scalar_select %p34, 0, %s33
      %s36 = ssub.s32 %s23, %s35
      %p37 = scmp.eq.s32.totalorder %s36, 0
      %s39 = sadd.s32 %s38, 1
      %s40 = scalar_select %p37, %s38, %s39
      %p43 = pneg %p37
      %p44 = scmp.eq.s32.totalorder %s16, 1
      %p45 = por %p43, %p44
      %p46 = scmp.ne.s32.totalorder %s38, %s41
      %p47 = scmp.eq.s32.totalorder %s16, 0
      %p48 = por %p46, %p47
      %p49 = scmp.ne.s32.totalorder %s38, %s41
      %p50 = scmp.eq.s32.totalorder %s21, 1
      %p51 = por %p49, %p50
      %p52 = scmp.ne.s32.totalorder %s41, %s42
      %p53 = scmp.eq.s32.totalorder %s21, 0
      %p54 = por %p52, %p53
      %p55 = scmp.ne.s32.totalorder %s41, %s42
      %p56 = scmp.eq.s32.totalorder %s22, 1
      %p57 = por %p55, %p56
      %p59 = scmp.ne.s32.totalorder %s42, %s58
      %p60 = scmp.eq.s32.totalorder %s22, 0
      %p61 = por %p59, %p60
      %s62 = ssub.s32 %s24, %s31
      %p63 = scmp.eq.s32.totalorder %s62, 0
      %s65 = sadd.s32 %s64, 1
      %s66 = scalar_select %p63, %s64, %s65
      %p69 = pneg %p63
      %p70 = scmp.eq.s32.totalorder %s16, 1
      %p71 = por %p69, %p70
      %p72 = scmp.ne.s32.totalorder %s64, %s67
      %p73 = scmp.eq.s32.totalorder %s16, 0
      %p74 = por %p72, %p73
      %p75 = scmp.ne.s32.totalorder %s64, %s67
      %p76 = scmp.eq.s32.totalorder %s21, 1
      %p77 = por %p75, %p76
      %p78 = scmp.ne.s32.totalorder %s67, %s68
      %p79 = scmp.eq.s32.totalorder %s21, 0
      %p80 = por %p78, %p79
      %p81 = scmp.ne.s32.totalorder %s67, %s68
      %p82 = scmp.eq.s32.totalorder %s22, 1
      %p83 = por %p81, %p82
      %p85 = scmp.ne.s32.totalorder %s68, %s84
      %p86 = scmp.eq.s32.totalorder %s22, 0
      %p87 = por %p85, %p86
      %s88 = ssub.s32 %s24, %s31
      %p89 = scmp.eq.s32.totalorder %s88, 0
      %s91 = sadd.s32 %s90, 1
      %s92 = scalar_select %p89, %s90, %s91
      %p95 = pneg %p89
      %p96 = scmp.eq.s32.totalorder %s16, 1
      %p97 = por %p95, %p96
      %p98 = scmp.ne.s32.totalorder %s90, %s93
      %p99 = scmp.eq.s32.totalorder %s16, 0
      %p100 = por %p98, %p99
      %p101 = scmp.ne.s32.totalorder %s90, %s93
      %p102 = scmp.eq.s32.totalorder %s21, 1
      %p103 = por %p101, %p102
      %p104 = scmp.ne.s32.totalorder %s93, %s94
      %p105 = scmp.eq.s32.totalorder %s21, 0
      %p106 = por %p104, %p105
      %p107 = scmp.ne.s32.totalorder %s93, %s94
      %p108 = scmp.eq.s32.totalorder %s22, 1
      %p109 = por %p107, %p108
      %p111 = scmp.ne.s32.totalorder %s94, %s110
      %p112 = scmp.eq.s32.totalorder %s22, 0
      %p113 = por %p111, %p112
      %s114 = ssub.s32 %s23, %s35
      %p115 = scmp.eq.s32.totalorder %s114, 0
      %s117 = sadd.s32 %s116, 1
      %s118 = scalar_select %p115, %s116, %s117
      %p121 = pneg %p115
      %p122 = scmp.eq.s32.totalorder %s16, 1
      %p123 = por %p121, %p122
      %p124 = scmp.ne.s32.totalorder %s116, %s119
      %p125 = scmp.eq.s32.totalorder %s16, 0
      %p126 = por %p124, %p125
      %p127 = scmp.ne.s32.totalorder %s116, %s119
      %p128 = scmp.eq.s32.totalorder %s21, 1
      %p129 = por %p127, %p128
      %p130 = scmp.ne.s32.totalorder %s119, %s120
      %p131 = scmp.eq.s32.totalorder %s21, 0
      %p132 = por %p130, %p131
      %p133 = scmp.ne.s32.totalorder %s119, %s120
      %p134 = scmp.eq.s32.totalorder %s22, 1
      %p135 = por %p133, %p134
      %p137 = scmp.ne.s32.totalorder %s120, %s136
      %p138 = scmp.eq.s32.totalorder %s22, 0
      %p139 = por %p137, %p138
      %p140 = scmp.le.s32.totalorder 1, %s16
      %p141 = scmp.lt.s32.totalorder %s16, 3
      %p142 = pnand %p140, %p141
      %p143 = pneg %p142
      // Predicated region
      $region9: #{_feed_forward_impl.1} parent=5 // pred_check
        _
      $region10: #{_feed_forward_impl.1} parent=5 // pred_check_branch
        %145 = sbr.rel (%p142) target = $region12
      $region11: #{_feed_forward_impl.1} parent=5 // pred_region
        %s146 = ssub.s32 %s16, 1
        // Predicated region
        $region13: #{_feed_forward_impl.1} parent=11 // pred_check
          %p147 = pneg %p54
        $region14: #{_feed_forward_impl.1} parent=11 // pred_check_branch
          %149 = sbr.rel (%p147) target = $region16
        $region15: #{_feed_forward_impl.1} parent=11 // pred_region
          %s150 = smul.u32 2, %s25
          %p151 = scmp.lt.s32.totalorder %s150, 1
          %s152 = scalar_select %p151, %s150, 1
          %s153 = smul.addr %s152, 2
          %s154 = smul.addr %s153, 4
          %s155 = scalar_lea.vmem %s0, %s154
          %s156 = smul.u32 2, %s25
        $region16: #{_feed_forward_impl.1} parent=11 // pred_fallthru
          _
      $region12: #{_feed_forward_impl.1} parent=5 // pred_fallthru
        _
      %p157 = scmp.lt.s32.totalorder %s16, 2
      // Predicated region
      $region17: #{_feed_forward_impl.1} parent=5 // pred_check
        %p158 = pneg %p157
      $region18: #{_feed_forward_impl.1} parent=5 // pred_check_branch
        %160 = sbr.rel (%p158) target = $region20
      $region19: #{_feed_forward_impl.1} parent=5 // pred_region
        // Predicated region
        $region21: #{_feed_forward_impl.1} parent=19 // pred_check
          %p161 = pneg %p74
        $region22: #{_feed_forward_impl.1} parent=19 // pred_check_branch
          %163 = sbr.rel (%p161) target = $region24
        $region23: #{_feed_forward_impl.1} parent=19 // pred_region
          %s164 = sand.u32 %s64, 1
          %s165 = scalar_lea.sflag [#allocation4], %s164
          %s166 = sand.u32 %s64, 1
          %s167 = smul.addr %s166, 512
          %s168 = scalar_lea.vmem [#allocation3], %s167
          %s169 = smul.u32 2, %s24
          %s171 = ssub.s32 8192, 8192
          %172 = vsyncadd %s165, %s171
          %s173 = smul.addr %s169, 64
          %s174 = scalar_lea.hbm %s1, %s173
          %s175 = sshll.u32 %s168, 4
          %s176 = int_to_ptr.vmem [resolvable:$true] %s175
          %181 = dma.hbm_to_vmem [thread:$0]  %s174, 8192, %s176, %s165, 256, 128, 8
        $region24: #{_feed_forward_impl.1} parent=19 // pred_fallthru
          _
        // Predicated region
        $region25: #{_feed_forward_impl.1} parent=19 // pred_check
          %p182 = pneg %p100
        $region26: #{_feed_forward_impl.1} parent=19 // pred_check_branch
          %184 = sbr.rel (%p182) target = $region28
        $region27: #{_feed_forward_impl.1} parent=19 // pred_region
          %s185 = sand.u32 %s90, 1
          %s186 = scalar_lea.sflag [#allocation7], %s185
          %s187 = sand.u32 %s90, 1
          %s188 = smul.addr %s187, 256
          %s189 = scalar_lea.vmem [#allocation6], %s188
          %s190 = smul.u32 32, %s24
          %s192 = ssub.s32 4096, 4096
          %193 = vsyncadd %s186, %s192
          %s194 = smul.addr %s190, 2
          %s195 = smul.addr %s194, 64
          %s196 = scalar_lea.hbm %s2, %s195
          %s197 = sshll.u32 %s189, 4
          %s198 = int_to_ptr.vmem [resolvable:$true] %s197
          %203 = dma.hbm_to_vmem [thread:$0]  %s196, 4096, %s198, %s186, 128, 128, 8
        $region28: #{_feed_forward_impl.1} parent=19 // pred_fallthru
          _
      $region20: #{_feed_forward_impl.1} parent=5 // pred_fallthru
        _
      %p204 = scmp.le.s32.totalorder 1, %s16
      %p205 = scmp.lt.s32.totalorder %s16, 3
      %p206 = pnand %p204, %p205
      %p207 = pneg %p206
      // Predicated region
      $region29: #{_feed_forward_impl.1} parent=5 // pred_check
        _
      $region30: #{_feed_forward_impl.1} parent=5 // pred_check_branch
        %209 = sbr.rel (%p206) target = $region32
      $region31: #{_feed_forward_impl.1} parent=5 // pred_region
        %s210 = ssub.s32 %s16, 1
        %s211 = sand.u32 %s67, 1
        %s212 = scalar_lea.sflag [#allocation4], %s211
        %s213 = sand.u32 %s67, 1
        %s214 = smul.addr %s213, 512
        %s215 = scalar_lea.vmem [#allocation3], %s214
        // Predicated region
        $region33: #{_feed_forward_impl.1} parent=31 // pred_check
          %p216 = pneg %p80
        $region34: #{_feed_forward_impl.1} parent=31 // pred_check_branch
          %218 = sbr.rel (%p216) target = $region36
        $region35: #{_feed_forward_impl.1} parent=31 // pred_region
          %219 = dma.done %s212, 8192
        $region36: #{_feed_forward_impl.1} parent=31 // pred_fallthru
          _
        %s220 = sand.u32 %s93, 1
        %s221 = scalar_lea.sflag [#allocation7], %s220
        %s222 = sand.u32 %s93, 1
        %s223 = smul.addr %s222, 256
        %s224 = scalar_lea.vmem [#allocation6], %s223
        // Predicated region
        $region37: #{_feed_forward_impl.1} parent=31 // pred_check
          %p225 = pneg %p106
        $region38: #{_feed_forward_impl.1} parent=31 // pred_check_branch
          %227 = sbr.rel (%p225) target = $region40
        $region39: #{_feed_forward_impl.1} parent=31 // pred_region
          %228 = dma.done %s221, 4096
        $region40: #{_feed_forward_impl.1} parent=31 // pred_fallthru
          _
        %s229 = smul.u32 2, %s25
        %p230 = scmp.lt.s32.totalorder %s229, 1
        %s231 = scalar_select %p230, %s229, 1
        %s232 = smul.addr %s231, 2
        %s233 = smul.addr %s232, 4
        %s234 = scalar_lea.vmem %s0, %s233
        %p235 = pneg %p54
        %p236 = pneg %p51
        %s237 = sand.u32 %s67, 1
        %s238 = scalar_lea.sflag [#allocation4], %s237
        %s239 = sand.u32 %s67, 1
        %s240 = smul.addr %s239, 512
        %s241 = scalar_lea.vmem [#allocation3], %s240
        %p242 = pneg %p80
        %p243 = pneg %p77
        %s244 = sand.u32 %s93, 1
        %s245 = scalar_lea.sflag [#allocation7], %s244
        %s246 = sand.u32 %s93, 1
        %s247 = smul.addr %s246, 256
        %s248 = scalar_lea.vmem [#allocation6], %s247
        %p249 = pneg %p106
        %p250 = pneg %p103
        %p251 = pneg %p132
        %p252 = pneg %p129
        %s253 = smul.u32 2, %s25
        %p254 = scmp.lt.s32.totalorder %s253, 1
        %s255 = scalar_select %p254, %s253, 1
        %s256 = smul.addr %s255, 2
        %s257 = smul.addr %s256, 4
        %s258 = scalar_lea.vmem %s0, %s257
        %s259 = smul.u32 2, %s25
        %s260 = smul.u32 2, %s26
        %s261 = smul.u32 32, %s26
        %s262 = smul.u32 2, %s25
        %p263 = scmp.eq.s32.totalorder %s26, 0
        // Predicated region
        $region41: #{_feed_forward_impl.1} parent=31 // pred_check
          %p264 = pneg %p263
        $region42: #{_feed_forward_impl.1} parent=31 // pred_check_branch
          %266 = sbr.rel (%p264) target = $region44
        $region43: #{_feed_forward_impl.1} parent=31 // pred_region
          %267 = vst [vmem:[#allocation2] sm:$0xff] 0.0
          %268 = vst [vmem:[#allocation2 + $0x8] sm:$0xff] 0.0
          %269 = vst [vmem:[#allocation2 + $0x10] sm:$0xff] 0.0
          %270 = vst [vmem:[#allocation2 + $0x18] sm:$0xff] 0.0
        $region44: #{_feed_forward_impl.1} parent=31 // pred_fallthru
          _
        %v271 = vld [vmem:[%s258] sm:$0xff]
        %v272 = vld [vmem:[%s258 + $0x8] sm:$0xff]
        %v273 = vld [vmem:[%s215] sm:$0xff]
        %v274 = vld [vmem:[%s215 + $0x8] sm:$0xff]
        %v275 = vld [vmem:[%s215 + $0x10] sm:$0xff]
        %v276 = vld [vmem:[%s215 + $0x18] sm:$0xff]
        %v277 = vld [vmem:[%s215 + $0x20] sm:$0xff]
        %v278 = vld [vmem:[%s215 + $0x28] sm:$0xff]
        %v279 = vld [vmem:[%s215 + $0x30] sm:$0xff]
        %v280 = vld [vmem:[%s215 + $0x38] sm:$0xff]
        %v281 = vld [vmem:[%s215 + $0x40] sm:$0xff]
        %v282 = vld [vmem:[%s215 + $0x48] sm:$0xff]
        %v283 = vld [vmem:[%s215 + $0x50] sm:$0xff]
        %v284 = vld [vmem:[%s215 + $0x58] sm:$0xff]
        %v285 = vld [vmem:[%s215 + $0x60] sm:$0xff]
        %v286 = vld [vmem:[%s215 + $0x68] sm:$0xff]
        %v287 = vld [vmem:[%s215 + $0x70] sm:$0xff]
        %v288 = vld [vmem:[%s215 + $0x78] sm:$0xff]
        %v289 = vld [vmem:[%s215 + $0x80] sm:$0xff]
        %v290 = vld [vmem:[%s215 + $0x88] sm:$0xff]
        %v291 = vld [vmem:[%s215 + $0x90] sm:$0xff]
        %v292 = vld [vmem:[%s215 + $0x98] sm:$0xff]
        %v293 = vld [vmem:[%s215 + $0xa0] sm:$0xff]
        %v294 = vld [vmem:[%s215 + $0xa8] sm:$0xff]
        %v295 = vld [vmem:[%s215 + $0xb0] sm:$0xff]
        %v296 = vld [vmem:[%s215 + $0xb8] sm:$0xff]
        %v297 = vld [vmem:[%s215 + $0xc0] sm:$0xff]
        %v298 = vld [vmem:[%s215 + $0xc8] sm:$0xff]
        %v299 = vld [vmem:[%s215 + $0xd0] sm:$0xff]
        %v300 = vld [vmem:[%s215 + $0xd8] sm:$0xff]
        %v301 = vld [vmem:[%s215 + $0xe0] sm:$0xff]
        %v302 = vld [vmem:[%s215 + $0xe8] sm:$0xff]
        %v303 = vld [vmem:[%s215 + $0xf0] sm:$0xff]
        %v304 = vld [vmem:[%s215 + $0xf8] sm:$0xff]
        %v307 = vunpack.c.l.b16 %v271
        %v308 = vunpack.c.h.b16 %v271
        %v309 = vunpack.c.l.b16 %v272
        %v310 = vunpack.c.h.b16 %v272
        %v311 = vpack.c.b16 %v309, %v307
        %v312 = vpack.c.b16 %v310, %v308
        %v347 = vunpack.c.l.b16 %v273
        %v348 = vunpack.c.h.b16 %v273
        %v349 = vunpack.c.l.b16 %v274
        %v350 = vunpack.c.h.b16 %v274
        %v351 = vunpack.c.l.b16 %v275
        %v352 = vunpack.c.h.b16 %v275
        %v353 = vunpack.c.l.b16 %v276
        %v354 = vunpack.c.h.b16 %v276
        %v355 = vunpack.c.l.b16 %v277
        %v356 = vunpack.c.h.b16 %v277
        %v357 = vunpack.c.l.b16 %v278
        %v358 = vunpack.c.h.b16 %v278
        %v359 = vunpack.c.l.b16 %v279
        %v360 = vunpack.c.h.b16 %v279
        %v361 = vunpack.c.l.b16 %v280
        %v362 = vunpack.c.h.b16 %v280
        %v363 = vunpack.c.l.b16 %v281
        %v364 = vunpack.c.h.b16 %v281
        %v365 = vunpack.c.l.b16 %v282
        %v366 = vunpack.c.h.b16 %v282
        %v367 = vunpack.c.l.b16 %v283
        %v368 = vunpack.c.h.b16 %v283
        %v369 = vunpack.c.l.b16 %v284
        %v370 = vunpack.c.h.b16 %v284
        %v371 = vunpack.c.l.b16 %v285
        %v372 = vunpack.c.h.b16 %v285
        %v373 = vunpack.c.l.b16 %v286
        %v374 = vunpack.c.h.b16 %v286
        %v375 = vunpack.c.l.b16 %v287
        %v376 = vunpack.c.h.b16 %v287
        %v377 = vunpack.c.l.b16 %v288
        %v378 = vunpack.c.h.b16 %v288
        %v379 = vunpack.c.l.b16 %v289
        %v380 = vunpack.c.h.b16 %v289
        %v381 = vunpack.c.l.b16 %v290
        %v382 = vunpack.c.h.b16 %v290
        %v383 = vunpack.c.l.b16 %v291
        %v384 = vunpack.c.h.b16 %v291
        %v385 = vunpack.c.l.b16 %v292
        %v386 = vunpack.c.h.b16 %v292
        %v387 = vunpack.c.l.b16 %v293
        %v388 = vunpack.c.h.b16 %v293
        %v389 = vunpack.c.l.b16 %v294
        %v390 = vunpack.c.h.b16 %v294
        %v391 = vunpack.c.l.b16 %v295
        %v392 = vunpack.c.h.b16 %v295
        %v393 = vunpack.c.l.b16 %v296
        %v394 = vunpack.c.h.b16 %v296
        %v395 = vunpack.c.l.b16 %v297
        %v396 = vunpack.c.h.b16 %v297
        %v397 = vunpack.c.l.b16 %v298
        %v398 = vunpack.c.h.b16 %v298
        %v399 = vunpack.c.l.b16 %v299
        %v400 = vunpack.c.h.b16 %v299
        %v401 = vunpack.c.l.b16 %v300
        %v402 = vunpack.c.h.b16 %v300
        %v403 = vunpack.c.l.b16 %v301
        %v404 = vunpack.c.h.b16 %v301
        %v405 = vunpack.c.l.b16 %v302
        %v406 = vunpack.c.h.b16 %v302
        %v407 = vunpack.c.l.b16 %v303
        %v408 = vunpack.c.h.b16 %v303
        %v409 = vunpack.c.l.b16 %v304
        %v410 = vunpack.c.h.b16 %v304
        %v411 = vpack.c.b16 %v349, %v347
        %v412 = vpack.c.b16 %v350, %v348
        %v413 = vpack.c.b16 %v353, %v351
        %v414 = vpack.c.b16 %v354, %v352
        %v415 = vpack.c.b16 %v357, %v355
        %v416 = vpack.c.b16 %v358, %v356
        %v417 = vpack.c.b16 %v361, %v359
        %v418 = vpack.c.b16 %v362, %v360
        %v419 = vpack.c.b16 %v365, %v363
        %v420 = vpack.c.b16 %v366, %v364
        %v421 = vpack.c.b16 %v369, %v367
        %v422 = vpack.c.b16 %v370, %v368
        %v423 = vpack.c.b16 %v373, %v371
        %v424 = vpack.c.b16 %v374, %v372
        %v425 = vpack.c.b16 %v377, %v375
        %v426 = vpack.c.b16 %v378, %v376
        %v427 = vpack.c.b16 %v381, %v379
        %v428 = vpack.c.b16 %v382, %v380
        %v429 = vpack.c.b16 %v385, %v383
        %v430 = vpack.c.b16 %v386, %v384
        %v431 = vpack.c.b16 %v389, %v387
        %v432 = vpack.c.b16 %v390, %v388
        %v433 = vpack.c.b16 %v393, %v391
        %v434 = vpack.c.b16 %v394, %v392
        %v435 = vpack.c.b16 %v397, %v395
        %v436 = vpack.c.b16 %v398, %v396
        %v437 = vpack.c.b16 %v401, %v399
        %v438 = vpack.c.b16 %v402, %v400
        %v439 = vpack.c.b16 %v405, %v403
        %v440 = vpack.c.b16 %v406, %v404
        %v441 = vpack.c.b16 %v409, %v407
        %v442 = vpack.c.b16 %v410, %v408
        %475 = vmatprep.subr.bf16.mxu0 %v426
        %476 = vmatpush1.bf16.msra.mxu0 %v425
        %477 = vmatprep.subr.bf16.mxu0 %v424
        %478 = vmatpush1.bf16.msra.mxu0 %v423
        %479 = vmatprep.subr.bf16.mxu0 %v422
        %480 = vmatpush1.bf16.msra.mxu0 %v421
        %481 = vmatprep.subr.bf16.mxu0 %v420
        %482 = vmatpush1.bf16.msra.mxu0 %v419
        %483 = vmatprep.subr.bf16.mxu0 %v418
        %484 = vmatpush1.bf16.msra.mxu0 %v417
        %485 = vmatprep.subr.bf16.mxu0 %v416
        %486 = vmatpush1.bf16.msra.mxu0 %v415
        %487 = vmatprep.subr.bf16.mxu0 %v414
        %488 = vmatpush1.bf16.msra.mxu0 %v413
        %489 = vmatprep.subr.bf16.mxu0 %v412
        %490 = vmatpush1.bf16.msra.mxu0 %v411
        %491 = vmatprep.subr.bf16.mxu0 %v442
        %492 = vmatpush2.bf16.msra.mxu0 %v441
        %493 = vmatprep.subr.bf16.mxu0 %v440
        %494 = vmatpush2.bf16.msra.mxu0 %v439
        %495 = vmatprep.subr.bf16.mxu0 %v438
        %496 = vmatpush2.bf16.msra.mxu0 %v437
        %497 = vmatprep.subr.bf16.mxu0 %v436
        %498 = vmatpush2.bf16.msra.mxu0 %v435
        %499 = vmatprep.subr.bf16.mxu0 %v434
        %500 = vmatpush2.bf16.msra.mxu0 %v433
        %501 = vmatprep.subr.bf16.mxu0 %v432
        %502 = vmatpush2.bf16.msra.mxu0 %v431
        %503 = vmatprep.subr.bf16.mxu0 %v430
        %504 = vmatpush2.bf16.msra.mxu0 %v429
        %505 = vmatprep.subr.bf16.mxu0 %v428
        %506 = vmatpush2.bf16.msra.mxu0 %v427
        %507 = vmatprep.mubr.bf16.mxu0 %v312
        %508 = vmatmul.mubr.bf16.gmra.mxu0 %v311
        %v509 = vpop.f32.mrf.mxu0
        %v510 = vadd.f32 0.0, %v509
        %v511 = vpop.f32.mrf.mxu0
        %v512 = vadd.f32 0.0, %v511
        %v513 = vpop.f32.mrf.mxu0
        %v514 = vadd.f32 0.0, %v513
        %v515 = vpop.f32.mrf.mxu0
        %v516 = vadd.f32 0.0, %v515
        %517 = vdwg.mxu0
        %s518 = scalar_lea.vmem %s215, 256 [#allocation3]
        %v519 = vld [vmem:[%s518] sm:$0xff]
        %v520 = vld [vmem:[%s518 + $0x8] sm:$0xff]
        %v521 = vld [vmem:[%s518 + $0x10] sm:$0xff]
        %v522 = vld [vmem:[%s518 + $0x18] sm:$0xff]
        %v523 = vld [vmem:[%s518 + $0x20] sm:$0xff]
        %v524 = vld [vmem:[%s518 + $0x28] sm:$0xff]
        %v525 = vld [vmem:[%s518 + $0x30] sm:$0xff]
        %v526 = vld [vmem:[%s518 + $0x38] sm:$0xff]
        %v527 = vld [vmem:[%s518 + $0x40] sm:$0xff]
        %v528 = vld [vmem:[%s518 + $0x48] sm:$0xff]
        %v529 = vld [vmem:[%s518 + $0x50] sm:$0xff]
        %v530 = vld [vmem:[%s518 + $0x58] sm:$0xff]
        %v531 = vld [vmem:[%s518 + $0x60] sm:$0xff]
        %v532 = vld [vmem:[%s518 + $0x68] sm:$0xff]
        %v533 = vld [vmem:[%s518 + $0x70] sm:$0xff]
        %v534 = vld [vmem:[%s518 + $0x78] sm:$0xff]
        %v535 = vld [vmem:[%s518 + $0x80] sm:$0xff]
        %v536 = vld [vmem:[%s518 + $0x88] sm:$0xff]
        %v537 = vld [vmem:[%s518 + $0x90] sm:$0xff]
        %v538 = vld [vmem:[%s518 + $0x98] sm:$0xff]
        %v539 = vld [vmem:[%s518 + $0xa0] sm:$0xff]
        %v540 = vld [vmem:[%s518 + $0xa8] sm:$0xff]
        %v541 = vld [vmem:[%s518 + $0xb0] sm:$0xff]
        %v542 = vld [vmem:[%s518 + $0xb8] sm:$0xff]
        %v543 = vld [vmem:[%s518 + $0xc0] sm:$0xff]
        %v544 = vld [vmem:[%s518 + $0xc8] sm:$0xff]
        %v545 = vld [vmem:[%s518 + $0xd0] sm:$0xff]
        %v546 = vld [vmem:[%s518 + $0xd8] sm:$0xff]
        %v547 = vld [vmem:[%s518 + $0xe0] sm:$0xff]
        %v548 = vld [vmem:[%s518 + $0xe8] sm:$0xff]
        %v549 = vld [vmem:[%s518 + $0xf0] sm:$0xff]
        %v550 = vld [vmem:[%s518 + $0xf8] sm:$0xff]
        %v583 = vunpack.c.l.b16 %v519
        %v584 = vunpack.c.h.b16 %v519
        %v585 = vunpack.c.l.b16 %v520
        %v586 = vunpack.c.h.b16 %v520
        %v587 = vunpack.c.l.b16 %v521
        %v588 = vunpack.c.h.b16 %v521
        %v589 = vunpack.c.l.b16 %v522
        %v590 = vunpack.c.h.b16 %v522
        %v591 = vunpack.c.l.b16 %v523
        %v592 = vunpack.c.h.b16 %v523
        %v593 = vunpack.c.l.b16 %v524
        %v594 = vunpack.c.h.b16 %v524
        %v595 = vunpack.c.l.b16 %v525
        %v596 = vunpack.c.h.b16 %v525
        %v597 = vunpack.c.l.b16 %v526
        %v598 = vunpack.c.h.b16 %v526
        %v599 = vunpack.c.l.b16 %v527
        %v600 = vunpack.c.h.b16 %v527
        %v601 = vunpack.c.l.b16 %v528
        %v602 = vunpack.c.h.b16 %v528
        %v603 = vunpack.c.l.b16 %v529
        %v604 = vunpack.c.h.b16 %v529
        %v605 = vunpack.c.l.b16 %v530
        %v606 = vunpack.c.h.b16 %v530
        %v607 = vunpack.c.l.b16 %v531
        %v608 = vunpack.c.h.b16 %v531
        %v609 = vunpack.c.l.b16 %v532
        %v610 = vunpack.c.h.b16 %v532
        %v611 = vunpack.c.l.b16 %v533
        %v612 = vunpack.c.h.b16 %v533
        %v613 = vunpack.c.l.b16 %v534
        %v614 = vunpack.c.h.b16 %v534
        %v615 = vunpack.c.l.b16 %v535
        %v616 = vunpack.c.h.b16 %v535
        %v617 = vunpack.c.l.b16 %v536
        %v618 = vunpack.c.h.b16 %v536
        %v619 = vunpack.c.l.b16 %v537
        %v620 = vunpack.c.h.b16 %v537
        %v621 = vunpack.c.l.b16 %v538
        %v622 = vunpack.c.h.b16 %v538
        %v623 = vunpack.c.l.b16 %v539
        %v624 = vunpack.c.h.b16 %v539
        %v625 = vunpack.c.l.b16 %v540
        %v626 = vunpack.c.h.b16 %v540
        %v627 = vunpack.c.l.b16 %v541
        %v628 = vunpack.c.h.b16 %v541
        %v629 = vunpack.c.l.b16 %v542
        %v630 = vunpack.c.h.b16 %v542
        %v631 = vunpack.c.l.b16 %v543
        %v632 = vunpack.c.h.b16 %v543
        %v633 = vunpack.c.l.b16 %v544
        %v634 = vunpack.c.h.b16 %v544
        %v635 = vunpack.c.l.b16 %v545
        %v636 = vunpack.c.h.b16 %v545
        %v637 = vunpack.c.l.b16 %v546
        %v638 = vunpack.c.h.b16 %v546
        %v639 = vunpack.c.l.b16 %v547
        %v640 = vunpack.c.h.b16 %v547
        %v641 = vunpack.c.l.b16 %v548
        %v642 = vunpack.c.h.b16 %v548
        %v643 = vunpack.c.l.b16 %v549
        %v644 = vunpack.c.h.b16 %v549
        %v645 = vunpack.c.l.b16 %v550
        %v646 = vunpack.c.h.b16 %v550
        %v647 = vpack.c.b16 %v585, %v583
        %v648 = vpack.c.b16 %v586, %v584
        %v649 = vpack.c.b16 %v589, %v587
        %v650 = vpack.c.b16 %v590, %v588
        %v651 = vpack.c.b16 %v593, %v591
        %v652 = vpack.c.b16 %v594, %v592
        %v653 = vpack.c.b16 %v597, %v595
        %v654 = vpack.c.b16 %v598, %v596
        %v655 = vpack.c.b16 %v601, %v599
        %v656 = vpack.c.b16 %v602, %v600
        %v657 = vpack.c.b16 %v605, %v603
        %v658 = vpack.c.b16 %v606, %v604
        %v659 = vpack.c.b16 %v609, %v607
        %v660 = vpack.c.b16 %v610, %v608
        %v661 = vpack.c.b16 %v613, %v611
        %v662 = vpack.c.b16 %v614, %v612
        %v663 = vpack.c.b16 %v617, %v615
        %v664 = vpack.c.b16 %v618, %v616
        %v665 = vpack.c.b16 %v621, %v619
        %v666 = vpack.c.b16 %v622, %v620
        %v667 = vpack.c.b16 %v625, %v623
        %v668 = vpack.c.b16 %v626, %v624
        %v669 = vpack.c.b16 %v629, %v627
        %v670 = vpack.c.b16 %v630, %v628
        %v671 = vpack.c.b16 %v633, %v631
        %v672 = vpack.c.b16 %v634, %v632
        %v673 = vpack.c.b16 %v637, %v635
        %v674 = vpack.c.b16 %v638, %v636
        %v675 = vpack.c.b16 %v641, %v639
        %v676 = vpack.c.b16 %v642, %v640
        %v677 = vpack.c.b16 %v645, %v643
        %v678 = vpack.c.b16 %v646, %v644
        %711 = vmatprep.subr.bf16.mxu0 %v662
        %712 = vmatpush1.bf16.msra.mxu0 %v661
        %713 = vmatprep.subr.bf16.mxu0 %v660
        %714 = vmatpush1.bf16.msra.mxu0 %v659
        %715 = vmatprep.subr.bf16.mxu0 %v658
        %716 = vmatpush1.bf16.msra.mxu0 %v657
        %717 = vmatprep.subr.bf16.mxu0 %v656
        %718 = vmatpush1.bf16.msra.mxu0 %v655
        %719 = vmatprep.subr.bf16.mxu0 %v654
        %720 = vmatpush1.bf16.msra.mxu0 %v653
        %721 = vmatprep.subr.bf16.mxu0 %v652
        %722 = vmatpush1.bf16.msra.mxu0 %v651
        %723 = vmatprep.subr.bf16.mxu0 %v650
        %724 = vmatpush1.bf16.msra.mxu0 %v649
        %725 = vmatprep.subr.bf16.mxu0 %v648
        %726 = vmatpush1.bf16.msra.mxu0 %v647
        %727 = vmatprep.subr.bf16.mxu0 %v678
        %728 = vmatpush2.bf16.msra.mxu0 %v677
        %729 = vmatprep.subr.bf16.mxu0 %v676
        %730 = vmatpush2.bf16.msra.mxu0 %v675
        %731 = vmatprep.subr.bf16.mxu0 %v674
        %732 = vmatpush2.bf16.msra.mxu0 %v673
        %733 = vmatprep.subr.bf16.mxu0 %v672
        %734 = vmatpush2.bf16.msra.mxu0 %v671
        %735 = vmatprep.subr.bf16.mxu0 %v670
        %736 = vmatpush2.bf16.msra.mxu0 %v669
        %737 = vmatprep.subr.bf16.mxu0 %v668
        %738 = vmatpush2.bf16.msra.mxu0 %v667
        %739 = vmatprep.subr.bf16.mxu0 %v666
        %740 = vmatpush2.bf16.msra.mxu0 %v665
        %741 = vmatprep.subr.bf16.mxu0 %v664
        %742 = vmatpush2.bf16.msra.mxu0 %v663
        %743 = vmatprep.mubr.bf16.mxu0 %v312
        %744 = vmatmul.mubr.bf16.gmra.mxu0 %v311
        %v745 = vpop.f32.mrf.mxu0
        %v746 = vadd.f32 0.0, %v745
        %v747 = vpop.f32.mrf.mxu0
        %v748 = vadd.f32 0.0, %v747
        %v749 = vpop.f32.mrf.mxu0
        %v750 = vadd.f32 0.0, %v749
        %v751 = vpop.f32.mrf.mxu0
        %v752 = vadd.f32 0.0, %v751
        %753 = vdwg.mxu0
        %v754 = vxor.u32 %v510, 2147483648
        %v755 = vxor.u32 %v512, 2147483648
        %v756 = vxor.u32 %v514, 2147483648
        %v757 = vxor.u32 %v516, 2147483648
        %v758 = vmul.f32 %v754, 1.442695
        %v759 = vpow.pop %v758
        %v760 = vmul.f32 %v755, 1.442695
        %v761 = vpow.pop %v760
        %v762 = vmul.f32 %v756, 1.442695
        %v763 = vpow.pop %v762
        %v764 = vmul.f32 %v757, 1.442695
        %v765 = vpow.pop %v764
        %v766 = vadd.f32 %v759, 1.0
        %v767 = vadd.f32 %v761, 1.0
        %v768 = vadd.f32 %v763, 1.0
        %v769 = vadd.f32 %v765, 1.0
        %v770 = vrcp.pop %v766
        %v771 = vmul.f32 1.0, %v770
        %v772 = vrcp.pop %v767
        %v773 = vmul.f32 1.0, %v772
        %v774 = vrcp.pop %v768
        %v775 = vmul.f32 1.0, %v774
        %v776 = vrcp.pop %v769
        %v777 = vmul.f32 1.0, %v776
        %v778 = vmul.f32 %v510, %v771
        %v779 = vmul.f32 %v512, %v773
        %v780 = vmul.f32 %v514, %v775
        %v781 = vmul.f32 %v516, %v777
        %v782 = vmul.f32 %v778, %v746
        %v783 = vmul.f32 %v779, %v748
        %v784 = vmul.f32 %v780, %v750
        %v785 = vmul.f32 %v781, %v752
        %v786 = vld [vmem:[#allocation2] sm:$0xff]
        %v787 = vld [vmem:[#allocation2 + $0x8] sm:$0xff]
        %v788 = vld [vmem:[#allocation2 + $0x10] sm:$0xff]
        %v789 = vld [vmem:[#allocation2 + $0x18] sm:$0xff]
        %v790 = vpack.c.bf16 %v784, %v782
        %v791 = vpack.c.bf16 %v785, %v783
        %v792 = vld [vmem:[%s224] sm:$0xff]
        %v793 = vld [vmem:[%s224 + $0x8] sm:$0xff]
        %v794 = vld [vmem:[%s224 + $0x10] sm:$0xff]
        %v795 = vld [vmem:[%s224 + $0x18] sm:$0xff]
        %v796 = vld [vmem:[%s224 + $0x20] sm:$0xff]
        %v797 = vld [vmem:[%s224 + $0x28] sm:$0xff]
        %v798 = vld [vmem:[%s224 + $0x30] sm:$0xff]
        %v799 = vld [vmem:[%s224 + $0x38] sm:$0xff]
        %v800 = vld [vmem:[%s224 + $0x40] sm:$0xff]
        %v801 = vld [vmem:[%s224 + $0x48] sm:$0xff]
        %v802 = vld [vmem:[%s224 + $0x50] sm:$0xff]
        %v803 = vld [vmem:[%s224 + $0x58] sm:$0xff]
        %v804 = vld [vmem:[%s224 + $0x60] sm:$0xff]
        %v805 = vld [vmem:[%s224 + $0x68] sm:$0xff]
        %v806 = vld [vmem:[%s224 + $0x70] sm:$0xff]
        %v807 = vld [vmem:[%s224 + $0x78] sm:$0xff]
        %v808 = vld [vmem:[%s224 + $0x80] sm:$0xff]
        %v809 = vld [vmem:[%s224 + $0x88] sm:$0xff]
        %v810 = vld [vmem:[%s224 + $0x90] sm:$0xff]
        %v811 = vld [vmem:[%s224 + $0x98] sm:$0xff]
        %v812 = vld [vmem:[%s224 + $0xa0] sm:$0xff]
        %v813 = vld [vmem:[%s224 + $0xa8] sm:$0xff]
        %v814 = vld [vmem:[%s224 + $0xb0] sm:$0xff]
        %v815 = vld [vmem:[%s224 + $0xb8] sm:$0xff]
        %v816 = vld [vmem:[%s224 + $0xc0] sm:$0xff]
        %v817 = vld [vmem:[%s224 + $0xc8] sm:$0xff]
        %v818 = vld [vmem:[%s224 + $0xd0] sm:$0xff]
        %v819 = vld [vmem:[%s224 + $0xd8] sm:$0xff]
        %v820 = vld [vmem:[%s224 + $0xe0] sm:$0xff]
        %v821 = vld [vmem:[%s224 + $0xe8] sm:$0xff]
        %v822 = vld [vmem:[%s224 + $0xf0] sm:$0xff]
        %v823 = vld [vmem:[%s224 + $0xf8] sm:$0xff]
        %v856 = vunpack.c.l.b16 %v792
        %v857 = vunpack.c.h.b16 %v792
        %v858 = vunpack.c.l.b16 %v793
        %v859 = vunpack.c.h.b16 %v793
        %v860 = vunpack.c.l.b16 %v794
        %v861 = vunpack.c.h.b16 %v794
        %v862 = vunpack.c.l.b16 %v795
        %v863 = vunpack.c.h.b16 %v795
        %v864 = vunpack.c.l.b16 %v796
        %v865 = vunpack.c.h.b16 %v796
        %v866 = vunpack.c.l.b16 %v797
        %v867 = vunpack.c.h.b16 %v797
        %v868 = vunpack.c.l.b16 %v798
        %v869 = vunpack.c.h.b16 %v798
        %v870 = vunpack.c.l.b16 %v799
        %v871 = vunpack.c.h.b16 %v799
        %v872 = vunpack.c.l.b16 %v800
        %v873 = vunpack.c.h.b16 %v800
        %v874 = vunpack.c.l.b16 %v801
        %v875 = vunpack.c.h.b16 %v801
        %v876 = vunpack.c.l.b16 %v802
        %v877 = vunpack.c.h.b16 %v802
        %v878 = vunpack.c.l.b16 %v803
        %v879 = vunpack.c.h.b16 %v803
        %v880 = vunpack.c.l.b16 %v804
        %v881 = vunpack.c.h.b16 %v804
        %v882 = vunpack.c.l.b16 %v805
        %v883 = vunpack.c.h.b16 %v805
        %v884 = vunpack.c.l.b16 %v806
        %v885 = vunpack.c.h.b16 %v806
        %v886 = vunpack.c.l.b16 %v807
        %v887 = vunpack.c.h.b16 %v807
        %v888 = vunpack.c.l.b16 %v808
        %v889 = vunpack.c.h.b16 %v808
        %v890 = vunpack.c.l.b16 %v809
        %v891 = vunpack.c.h.b16 %v809
        %v892 = vunpack.c.l.b16 %v810
        %v893 = vunpack.c.h.b16 %v810
        %v894 = vunpack.c.l.b16 %v811
        %v895 = vunpack.c.h.b16 %v811
        %v896 = vunpack.c.l.b16 %v812
        %v897 = vunpack.c.h.b16 %v812
        %v898 = vunpack.c.l.b16 %v813
        %v899 = vunpack.c.h.b16 %v813
        %v900 = vunpack.c.l.b16 %v814
        %v901 = vunpack.c.h.b16 %v814
        %v902 = vunpack.c.l.b16 %v815
        %v903 = vunpack.c.h.b16 %v815
        %v904 = vunpack.c.l.b16 %v816
        %v905 = vunpack.c.h.b16 %v816
        %v906 = vunpack.c.l.b16 %v817
        %v907 = vunpack.c.h.b16 %v817
        %v908 = vunpack.c.l.b16 %v818
        %v909 = vunpack.c.h.b16 %v818
        %v910 = vunpack.c.l.b16 %v819
        %v911 = vunpack.c.h.b16 %v819
        %v912 = vunpack.c.l.b16 %v820
        %v913 = vunpack.c.h.b16 %v820
        %v914 = vunpack.c.l.b16 %v821
        %v915 = vunpack.c.h.b16 %v821
        %v916 = vunpack.c.l.b16 %v822
        %v917 = vunpack.c.h.b16 %v822
        %v918 = vunpack.c.l.b16 %v823
        %v919 = vunpack.c.h.b16 %v823
        %v920 = vpack.c.b16 %v858, %v856
        %v921 = vpack.c.b16 %v859, %v857
        %v922 = vpack.c.b16 %v862, %v860
        %v923 = vpack.c.b16 %v863, %v861
        %v924 = vpack.c.b16 %v866, %v864
        %v925 = vpack.c.b16 %v867, %v865
        %v926 = vpack.c.b16 %v870, %v868
        %v927 = vpack.c.b16 %v871, %v869
        %v928 = vpack.c.b16 %v874, %v872
        %v929 = vpack.c.b16 %v875, %v873
        %v930 = vpack.c.b16 %v878, %v876
        %v931 = vpack.c.b16 %v879, %v877
        %v932 = vpack.c.b16 %v882, %v880
        %v933 = vpack.c.b16 %v883, %v881
        %v934 = vpack.c.b16 %v886, %v884
        %v935 = vpack.c.b16 %v887, %v885
        %v936 = vpack.c.b16 %v890, %v888
        %v937 = vpack.c.b16 %v891, %v889
        %v938 = vpack.c.b16 %v894, %v892
        %v939 = vpack.c.b16 %v895, %v893
        %v940 = vpack.c.b16 %v898, %v896
        %v941 = vpack.c.b16 %v899, %v897
        %v942 = vpack.c.b16 %v902, %v900
        %v943 = vpack.c.b16 %v903, %v901
        %v944 = vpack.c.b16 %v906, %v904
        %v945 = vpack.c.b16 %v907, %v905
        %v946 = vpack.c.b16 %v910, %v908
        %v947 = vpack.c.b16 %v911, %v909
        %v948 = vpack.c.b16 %v914, %v912
        %v949 = vpack.c.b16 %v915, %v913
        %v950 = vpack.c.b16 %v918, %v916
        %v951 = vpack.c.b16 %v919, %v917
        %984 = vmatprep.subr.bf16.mxu0 %v935
        %985 = vmatpush1.bf16.msra.mxu0 %v934
        %986 = vmatprep.subr.bf16.mxu0 %v933
        %987 = vmatpush1.bf16.msra.mxu0 %v932
        %988 = vmatprep.subr.bf16.mxu0 %v931
        %989 = vmatpush1.bf16.msra.mxu0 %v930
        %990 = vmatprep.subr.bf16.mxu0 %v929
        %991 = vmatpush1.bf16.msra.mxu0 %v928
        %992 = vmatprep.subr.bf16.mxu0 %v927
        %993 = vmatpush1.bf16.msra.mxu0 %v926
        %994 = vmatprep.subr.bf16.mxu0 %v925
        %995 = vmatpush1.bf16.msra.mxu0 %v924
        %996 = vmatprep.subr.bf16.mxu0 %v923
        %997 = vmatpush1.bf16.msra.mxu0 %v922
        %998 = vmatprep.subr.bf16.mxu0 %v921
        %999 = vmatpush1.bf16.msra.mxu0 %v920
        %1000 = vmatprep.subr.bf16.mxu0 %v951
        %1001 = vmatpush2.bf16.msra.mxu0 %v950
        %1002 = vmatprep.subr.bf16.mxu0 %v949
        %1003 = vmatpush2.bf16.msra.mxu0 %v948
        %1004 = vmatprep.subr.bf16.mxu0 %v947
        %1005 = vmatpush2.bf16.msra.mxu0 %v946
        %1006 = vmatprep.subr.bf16.mxu0 %v945
        %1007 = vmatpush2.bf16.msra.mxu0 %v944
        %1008 = vmatprep.subr.bf16.mxu0 %v943
        %1009 = vmatpush2.bf16.msra.mxu0 %v942
        %1010 = vmatprep.subr.bf16.mxu0 %v941
        %1011 = vmatpush2.bf16.msra.mxu0 %v940
        %1012 = vmatprep.subr.bf16.mxu0 %v939
        %1013 = vmatpush2.bf16.msra.mxu0 %v938
        %1014 = vmatprep.subr.bf16.mxu0 %v937
        %1015 = vmatpush2.bf16.msra.mxu0 %v936
        %1016 = vmatprep.mubr.bf16.mxu0 %v791
        %1017 = vmatmul.mubr.bf16.gmra.mxu0 %v790
        %v1018 = vpop.f32.mrf.mxu0
        %v1019 = vadd.f32 0.0, %v1018
        %v1020 = vpop.f32.mrf.mxu0
        %v1021 = vadd.f32 0.0, %v1020
        %v1022 = vpop.f32.mrf.mxu0
        %v1023 = vadd.f32 0.0, %v1022
        %v1024 = vpop.f32.mrf.mxu0
        %v1025 = vadd.f32 0.0, %v1024
        %1026 = vdwg.mxu0
        %v1027 = vadd.f32 %v786, %v1019
        %v1028 = vadd.f32 %v787, %v1021
        %v1029 = vadd.f32 %v788, %v1023
        %v1030 = vadd.f32 %v789, %v1025
        %1031 = vst [vmem:[#allocation2] sm:$0xff] %v1027
        %1032 = vst [vmem:[#allocation2 + $0x8] sm:$0xff] %v1028
        %1033 = vst [vmem:[#allocation2 + $0x10] sm:$0xff] %v1029
        %1034 = vst [vmem:[#allocation2 + $0x18] sm:$0xff] %v1030
        %p1035 = scmp.eq.s32.totalorder %s26, 1
        // Predicated region
        $region45: #{_feed_forward_impl.1} parent=31 // pred_check
          %p1036 = pneg %p1035
        $region46: #{_feed_forward_impl.1} parent=31 // pred_check_branch
          %1038 = sbr.rel (%p1036) target = $region48
        $region47: #{_feed_forward_impl.1} parent=31 // pred_region
          %v1039 = vld [vmem:[#allocation2] sm:$0xff]
          %v1040 = vld [vmem:[#allocation2 + $0x8] sm:$0xff]
          %v1041 = vld [vmem:[#allocation2 + $0x10] sm:$0xff]
          %v1042 = vld [vmem:[#allocation2 + $0x18] sm:$0xff]
          %1043 = vst [vmem:[#allocation8] sm:$0xff] %v1039
          %1044 = vst [vmem:[#allocation8 + $0x8] sm:$0xff] %v1040
          %1045 = vst [vmem:[#allocation8 + $0x10] sm:$0xff] %v1041
          %1046 = vst [vmem:[#allocation8 + $0x18] sm:$0xff] %v1042
        $region48: #{_feed_forward_impl.1} parent=31 // pred_fallthru
          _
        // Predicated region
        $region49: #{_feed_forward_impl.1} parent=31 // pred_check
          %p1047 = pneg %p129
        $region50: #{_feed_forward_impl.1} parent=31 // pred_check_branch
          %1049 = sbr.rel (%p1047) target = $region52
        $region51: #{_feed_forward_impl.1} parent=31 // pred_region
          %s1050 = smul.u32 2, %s25
          %s1052 = ssub.s32 512, 512
          %1053 = vsyncadd [#allocation5], %s1052
          %s1054 = smul.addr %s1050, 2
          %s1055 = smul.addr %s1054, 128
          %s1056 = scalar_lea.hbm %s3, %s1055
          %s1057 = sshll.u32 [#allocation8], 4
          %s1058 = int_to_ptr.vmem [resolvable:$true] %s1057
          %1063 = dma.vmem_to_hbm [thread:$0]  %s1058, 512, %s1056, [#allocation5], 256, 256, 16
        $region52: #{_feed_forward_impl.1} parent=31 // pred_fallthru
          _
        // Predicated region
        $region53: #{_feed_forward_impl.1} parent=31 // pred_check
          %p1064 = pneg %p129
        $region54: #{_feed_forward_impl.1} parent=31 // pred_check_branch
          %1066 = sbr.rel (%p1064) target = $region56
        $region55: #{_feed_forward_impl.1} parent=31 // pred_region
          %1067 = dma.done [#allocation5], 512
        $region56: #{_feed_forward_impl.1} parent=31 // pred_fallthru
          _
      $region32: #{_feed_forward_impl.1} parent=5 // pred_fallthru
        _
      %p1068 = scmp.le.s32.totalorder 2, %s16
      // Predicated region
      $region57: #{_feed_forward_impl.1} parent=5 // pred_check
        %p1069 = pneg %p1068
      $region58: #{_feed_forward_impl.1} parent=5 // pred_check_branch
        %1071 = sbr.rel (%p1069) target = $region60
      $region59: #{_feed_forward_impl.1} parent=5 // pred_region
        %s1072 = ssub.s32 %s16, 2
      $region60: #{_feed_forward_impl.1} parent=5 // pred_fallthru
        _
    $region6: #{_feed_forward_impl.1} parent=1 // loop_footer
      %s20 = sadd.s32 1, %s16
    $region7: #{_feed_forward_impl.1} parent=1 // loop_footer_branch
      %15 = sbr.rel target = $region3
    $region8: #{_feed_forward_impl.1} parent=1 // loop_exit
      _
    %1073 = vsyncpa [#allocation4], 1
    %s1074 = scalar_lea.sflag [#allocation4], 1
    %1075 = vsyncpa %s1074, 1
    %1076 = vsyncpa [#allocation7], 1
    %s1077 = scalar_lea.sflag [#allocation7], 1
    %1078 = vsyncpa %s1077, 1
    %1079 = vsyncpa [#allocation5], 1
    %s1080 = scalar_lea.sflag [#allocation5], 1
    %1081 = vsyncpa %s1080, 1

</llo_original>
